<compile_context>
chip_gen: v7x
topology: tpu7x:2x2x1
jax: 0.10.0
libtpu: 0.0.40
codegen_flags: <defaults>
</compile_context>

<pallas_src>
import jax
import jax.numpy as jnp
from jax import lax
from jax.experimental import pallas as pl
from jax.experimental.pallas import tpu as pltpu

MAXIMUM_ITERATION = 5  # stand-in for constants.MAXIMUM_ITERATION


def _pick_block_b(batch):
    """Largest batch tile <= 512 that divides the batch and is sublane-aligned."""
    for cand in (512, 256, 128, 64, 32, 16, 8):
        if batch % cand == 0:
            return cand
    return batch  # small / ragged batch: one whole-batch block


def _make_while_kernel(target_idx, test, n_iters):
    """Builds the fused While-loop kernel (target_idx / test are module constants)."""

    def kernel(c_ref, d_ref, u_ref, res_c_ref, res_d_ref, logp_ref):
        blk_b, dim = c_ref.shape
        # Static target-column mask (target_idx is a constructor constant).
        col = lax.broadcasted_iota(jnp.int32, (blk_b, dim), 1)
        is_tgt = col == target_idx

        c = c_ref[...]
        d = d_ref[...]
        res_c = c                  # res_states kept at static shape; rows are
        res_d = d                  # merged via masks instead of list filtering
        logp = jnp.zeros((blk_b, 1), jnp.float32)
        active = jnp.ones((blk_b, 1), jnp.bool_)

        # Fully unrolled loop (MAXIMUM_ITERATION + 1 is small and static) ->
        # one kernel launch, no host sync, the scheduler sees the whole body.
        for it in range(n_iters):
            # x.select_from_index(1, target_idx): static lane slice (no XLU).
            c_t = c[:, target_idx:target_idx + 1]          # (blk_b, 1)
            d_t = d[:, target_idx:target_idx + 1]
            lb = c_t - d_t                                  # target.getLeft()
            rb = c_t + d_t                                  # target.getRight()

            # extract_branch_probability (standard scoring branch).
            # TODO(synk): the 'hybrid' scoring branch mixes python max() with
            # tensors ambiguously; only the standard (else) scoring is done.
            left_m = rb <= test
            right_m = lb > test
            denom = rb - lb
            safe_denom = jnp.where(denom == 0.0, 1.0, denom)
            p_cross = (test - lb) / safe_denom
            p_left = jnp.where(left_m, 1.0, jnp.where(right_m, 0.0, p_cross))
            p_right = 1.0 - p_left

            # sample_from_p: Bernoulli(p_left) from pre-drawn uniforms (one
            # column per iteration; no in-kernel PRNG reseeding needed).
            go_left = u_ref[:, it:it + 1] < p_left
            went_left = active & go_left
            went_right = active & jnp.logical_not(go_left)

            # calculate_branch: split the target interval.
            min_rb = jnp.minimum(rb, test)                  # min(c+delta, test)
            max_lb = jnp.maximum(lb, test)                  # max(c-delta, test)
            new_lc = (lb + min_rb) * 0.5
            new_ld = (min_rb - lb) * 0.5
            new_rc = (max_lb + rb) * 0.5
            new_rd = (rb - max_lb) * 0.5

            # orelse branch exits the loop -> merge into res_states.
            res_c = jnp.where(went_right, jnp.where(is_tgt, new_rc, c), res_c)
            res_d = jnp.where(went_right, jnp.where(is_tgt, new_rd, d), res_d)

            # log-prob accumulation for the branch each active row took.
            logp = logp + jnp.where(
                went_left, jnp.log(jnp.maximum(p_left, 1e-20)),
                jnp.where(went_right, jnp.log(jnp.maximum(p_right, 1e-20)),
                          0.0))

            # body branch keeps looping: patch the target column with the left
            # split, then apply the loop body.
            # TODO(synk): `self.body` is an arbitrary nn.Module in the original;
            # a "decrement the loop variable" body is used so the loop makes
            # progress toward the test threshold.
            body_c = jnp.where(is_tgt, new_lc - 1.0, c)
            body_d = jnp.where(is_tgt, new_ld, d)
            c = jnp.where(went_left, body_c, c)
            d = jnp.where(went_left, body_d, d)
            active = went_left

        # Iteration cap reached: remaining body states merge into res_states.
        res_c_ref[...] = jnp.where(active, c, res_c)
        res_d_ref[...] = jnp.where(active, d, res_d)
        logp_ref[...] = logp

    return kernel


def build_while_forward(target_idx, test, max_iteration=MAXIMUM_ITERATION):
    """Returns a jitted forward(c, delta, key) -> (res_c, res_delta, log_p)."""
    n_iters = int(max_iteration) + 1
    kernel = _make_while_kernel(int(target_idx), float(test), n_iters)

    @jax.jit
    def forward(c, delta, key):
        batch, dim = c.shape
        # One uniform per row per iteration; counter-based key, single fused op.
        u = jax.random.uniform(key, (batch, n_iters), jnp.float32)

        blk_b = _pick_block_b(batch)
        grid = (batch // blk_b,)

        def spec(width):
            return pl.BlockSpec((blk_b, width), lambda i: (i, 0))

        res_c, res_d, logp = pl.pallas_call(
            kernel,
            out_shape=(
                jax.ShapeDtypeStruct((batch, dim), jnp.float32),   # res c
                jax.ShapeDtypeStruct((batch, dim), jnp.float32),   # res delta
                jax.ShapeDtypeStruct((batch, 1), jnp.float32),     # log p
            ),
            grid=grid,
            in_specs=[spec(dim), spec(dim), spec(n_iters)],
            out_specs=(spec(dim), spec(dim), spec(1)),
            compiler_params=pltpu.CompilerParams(
                dimension_semantics=("parallel",)),
        )(c, delta, u)
        return res_c, res_d, logp[:, 0]

    return forward


if __name__ == "__main__":
    key = jax.random.PRNGKey(0)
    B, D = 8, 32
    k1, k2, k3 = jax.random.split(key, 3)
    c = jax.random.uniform(k1, (B, D), jnp.float32, 2.0, 6.0)
    delta = jax.random.uniform(k2, (B, D), jnp.float32, 0.1, 1.0)

    while_forward = build_while_forward(target_idx=0, test=3.0)
    res_c, res_delta, logp = while_forward(c, delta, k3)
    jax.block_until_ready((res_c, res_delta, logp))
    print("KERNEL_OK")
</pallas_src>

<mosaic_0001>
module attributes {stable_mosaic.version = 11 : i64} {
  func.func @kernel(%arg0: i32, %arg1: memref<8x32xf32, #tpu.memory_space<vmem>>, %arg2: memref<8x32xf32, #tpu.memory_space<vmem>>, %arg3: memref<8x6xf32, #tpu.memory_space<vmem>>, %arg4: memref<8x32xf32, #tpu.memory_space<vmem>>, %arg5: memref<8x32xf32, #tpu.memory_space<vmem>>, %arg6: memref<8x1xf32, #tpu.memory_space<vmem>>) attributes {dimension_semantics = [#tpu.dimension_semantics<parallel>], iteration_bounds = array<i64: 1>, scalar_prefetch = 0 : i64, scratch_operands = 0 : i64, tpu.core_type = #tpu.core_type<tc>, window_params = [{transform_indices = @transform_0, window_bounds = array<i64: 8, 32>}, {transform_indices = @transform_1, window_bounds = array<i64: 8, 32>}, {transform_indices = @transform_2, window_bounds = array<i64: 8, 6>}, {transform_indices = @transform_3, window_bounds = array<i64: 8, 32>}, {transform_indices = @transform_4, window_bounds = array<i64: 8, 32>}, {transform_indices = @transform_5, window_bounds = array<i64: 8, 1>}]} {
    %0 = tpu.iota {dimensions = array<i32: 1>} : vector<8x32xi32>
    %c0_i32 = arith.constant 0 : i32
    %1 = vector.broadcast %c0_i32 : i32 to vector<8x32xi32>
    %2 = arith.cmpi eq, %0, %1 : vector<8x32xi32>
    %c0 = arith.constant 0 : index
    %c0_0 = arith.constant 0 : index
    %3 = vector.load %arg1[%c0, %c0_0] : memref<8x32xf32, #tpu.memory_space<vmem>>, vector<8x32xf32>
    %c0_1 = arith.constant 0 : index
    %c0_2 = arith.constant 0 : index
    %4 = vector.load %arg2[%c0_1, %c0_2] : memref<8x32xf32, #tpu.memory_space<vmem>>, vector<8x32xf32>
    %cst = arith.constant 0.000000e+00 : f32
    %5 = vector.broadcast %cst : f32 to vector<8x1xf32>
    %true = arith.constant true
    %6 = vector.broadcast %true : i1 to vector<8x1xi1>
    %7 = vector.extract_strided_slice %3 {offsets = [0, 0], sizes = [8, 1], strides = [1, 1]} : vector<8x32xf32> to vector<8x1xf32>
    %8 = vector.extract_strided_slice %4 {offsets = [0, 0], sizes = [8, 1], strides = [1, 1]} : vector<8x32xf32> to vector<8x1xf32>
    %9 = arith.subf %7, %8 : vector<8x1xf32>
    %10 = arith.addf %7, %8 : vector<8x1xf32>
    %cst_3 = arith.constant 3.000000e+00 : f32
    %11 = vector.broadcast %cst_3 : f32 to vector<8x1xf32>
    %12 = arith.cmpf ole, %10, %11 : vector<8x1xf32>
    %cst_4 = arith.constant 3.000000e+00 : f32
    %13 = vector.broadcast %cst_4 : f32 to vector<8x1xf32>
    %14 = arith.cmpf ogt, %9, %13 : vector<8x1xf32>
    %15 = arith.subf %10, %9 : vector<8x1xf32>
    %cst_5 = arith.constant 0.000000e+00 : f32
    %16 = vector.broadcast %cst_5 : f32 to vector<8x1xf32>
    %17 = arith.cmpf oeq, %15, %16 : vector<8x1xf32>
    %cst_6 = arith.constant 1.000000e+00 : f32
    %18 = vector.broadcast %cst_6 : f32 to vector<8x1xf32>
    %19 = arith.select %17, %18, %15 : vector<8x1xi1>, vector<8x1xf32>
    %cst_7 = arith.constant 3.000000e+00 : f32
    %20 = vector.broadcast %cst_7 : f32 to vector<8x1xf32>
    %21 = arith.subf %20, %9 : vector<8x1xf32>
    %22 = arith.divf %21, %19 : vector<8x1xf32>
    %cst_8 = arith.constant 0.000000e+00 : f32
    %23 = vector.broadcast %cst_8 : f32 to vector<8x1xf32>
    %24 = arith.select %14, %23, %22 : vector<8x1xi1>, vector<8x1xf32>
    %cst_9 = arith.constant 1.000000e+00 : f32
    %25 = vector.broadcast %cst_9 : f32 to vector<8x1xf32>
    %26 = arith.select %12, %25, %24 : vector<8x1xi1>, vector<8x1xf32>
    %cst_10 = arith.constant 1.000000e+00 : f32
    %27 = vector.broadcast %cst_10 : f32 to vector<8x1xf32>
    %28 = arith.subf %27, %26 : vector<8x1xf32>
    %c0_11 = arith.constant 0 : index
    %c0_12 = arith.constant 0 : index
    %29 = vector.load %arg3[%c0_11, %c0_12] : memref<8x6xf32, #tpu.memory_space<vmem>>, vector<8x1xf32>
    %30 = arith.cmpf olt, %29, %26 : vector<8x1xf32>
    %31 = arith.andi %6, %30 : vector<8x1xi1>
    %cst_13 = arith.constant dense<true> : vector<8x1xi1>
    %32 = arith.xori %30, %cst_13 : vector<8x1xi1>
    %33 = arith.andi %6, %32 : vector<8x1xi1>
    %cst_14 = arith.constant 3.000000e+00 : f32
    %34 = vector.broadcast %cst_14 : f32 to vector<8x1xf32>
    %35 = arith.minimumf %10, %34 : vector<8x1xf32>
    %cst_15 = arith.constant 3.000000e+00 : f32
    %36 = vector.broadcast %cst_15 : f32 to vector<8x1xf32>
    %37 = arith.maximumf %9, %36 : vector<8x1xf32>
    %38 = arith.addf %9, %35 : vector<8x1xf32>
    %cst_16 = arith.constant 5.000000e-01 : f32
    %39 = vector.broadcast %cst_16 : f32 to vector<8x1xf32>
    %40 = arith.mulf %38, %39 : vector<8x1xf32>
    %41 = arith.subf %35, %9 : vector<8x1xf32>
    %cst_17 = arith.constant 5.000000e-01 : f32
    %42 = vector.broadcast %cst_17 : f32 to vector<8x1xf32>
    %43 = arith.mulf %41, %42 : vector<8x1xf32>
    %44 = arith.addf %37, %10 : vector<8x1xf32>
    %cst_18 = arith.constant 5.000000e-01 : f32
    %45 = vector.broadcast %cst_18 : f32 to vector<8x1xf32>
    %46 = arith.mulf %44, %45 : vector<8x1xf32>
    %47 = arith.subf %10, %37 : vector<8x1xf32>
    %cst_19 = arith.constant 5.000000e-01 : f32
    %48 = vector.broadcast %cst_19 : f32 to vector<8x1xf32>
    %49 = arith.mulf %47, %48 : vector<8x1xf32>
    %50 = vector.shape_cast %46 : vector<8x1xf32> to vector<8x1xf32>
    %51 = vector.broadcast %50 : vector<8x1xf32> to vector<8x32xf32>
    %52 = arith.select %2, %51, %3 : vector<8x32xi1>, vector<8x32xf32>
    %53 = vector.shape_cast %33 : vector<8x1xi1> to vector<8x1xi1>
    %54 = vector.broadcast %53 : vector<8x1xi1> to vector<8x32xi1>
    %55 = arith.select %54, %52, %3 : vector<8x32xi1>, vector<8x32xf32>
    %56 = vector.shape_cast %49 : vector<8x1xf32> to vector<8x1xf32>
    %57 = vector.broadcast %56 : vector<8x1xf32> to vector<8x32xf32>
    %58 = arith.select %2, %57, %4 : vector<8x32xi1>, vector<8x32xf32>
    %59 = vector.shape_cast %33 : vector<8x1xi1> to vector<8x1xi1>
    %60 = vector.broadcast %59 : vector<8x1xi1> to vector<8x32xi1>
    %61 = arith.select %60, %58, %4 : vector<8x32xi1>, vector<8x32xf32>
    %cst_20 = arith.constant 9.99999968E-21 : f32
    %62 = vector.broadcast %cst_20 : f32 to vector<8x1xf32>
    %63 = arith.maximumf %26, %62 : vector<8x1xf32>
    %64 = math.log %63 : vector<8x1xf32>
    %cst_21 = arith.constant 9.99999968E-21 : f32
    %65 = vector.broadcast %cst_21 : f32 to vector<8x1xf32>
    %66 = arith.maximumf %28, %65 : vector<8x1xf32>
    %67 = math.log %66 : vector<8x1xf32>
    %cst_22 = arith.constant 0.000000e+00 : f32
    %68 = vector.broadcast %cst_22 : f32 to vector<8x1xf32>
    %69 = arith.select %33, %67, %68 : vector<8x1xi1>, vector<8x1xf32>
    %70 = arith.select %31, %64, %69 : vector<8x1xi1>, vector<8x1xf32>
    %71 = arith.addf %5, %70 : vector<8x1xf32>
    %cst_23 = arith.constant 1.000000e+00 : f32
    %72 = vector.broadcast %cst_23 : f32 to vector<8x1xf32>
    %73 = arith.subf %40, %72 : vector<8x1xf32>
    %74 = vector.shape_cast %73 : vector<8x1xf32> to vector<8x1xf32>
    %75 = vector.broadcast %74 : vector<8x1xf32> to vector<8x32xf32>
    %76 = arith.select %2, %75, %3 : vector<8x32xi1>, vector<8x32xf32>
    %77 = vector.shape_cast %43 : vector<8x1xf32> to vector<8x1xf32>
    %78 = vector.broadcast %77 : vector<8x1xf32> to vector<8x32xf32>
    %79 = arith.select %2, %78, %4 : vector<8x32xi1>, vector<8x32xf32>
    %80 = vector.shape_cast %31 : vector<8x1xi1> to vector<8x1xi1>
    %81 = vector.broadcast %80 : vector<8x1xi1> to vector<8x32xi1>
    %82 = arith.select %81, %76, %3 : vector<8x32xi1>, vector<8x32xf32>
    %83 = vector.shape_cast %31 : vector<8x1xi1> to vector<8x1xi1>
    %84 = vector.broadcast %83 : vector<8x1xi1> to vector<8x32xi1>
    %85 = arith.select %84, %79, %4 : vector<8x32xi1>, vector<8x32xf32>
    %86 = vector.extract_strided_slice %82 {offsets = [0, 0], sizes = [8, 1], strides = [1, 1]} : vector<8x32xf32> to vector<8x1xf32>
    %87 = vector.extract_strided_slice %85 {offsets = [0, 0], sizes = [8, 1], strides = [1, 1]} : vector<8x32xf32> to vector<8x1xf32>
    %88 = arith.subf %86, %87 : vector<8x1xf32>
    %89 = arith.addf %86, %87 : vector<8x1xf32>
    %cst_24 = arith.constant 3.000000e+00 : f32
    %90 = vector.broadcast %cst_24 : f32 to vector<8x1xf32>
    %91 = arith.cmpf ole, %89, %90 : vector<8x1xf32>
    %cst_25 = arith.constant 3.000000e+00 : f32
    %92 = vector.broadcast %cst_25 : f32 to vector<8x1xf32>
    %93 = arith.cmpf ogt, %88, %92 : vector<8x1xf32>
    %94 = arith.subf %89, %88 : vector<8x1xf32>
    %cst_26 = arith.constant 0.000000e+00 : f32
    %95 = vector.broadcast %cst_26 : f32 to vector<8x1xf32>
    %96 = arith.cmpf oeq, %94, %95 : vector<8x1xf32>
    %cst_27 = arith.constant 1.000000e+00 : f32
    %97 = vector.broadcast %cst_27 : f32 to vector<8x1xf32>
    %98 = arith.select %96, %97, %94 : vector<8x1xi1>, vector<8x1xf32>
    %cst_28 = arith.constant 3.000000e+00 : f32
    %99 = vector.broadcast %cst_28 : f32 to vector<8x1xf32>
    %100 = arith.subf %99, %88 : vector<8x1xf32>
    %101 = arith.divf %100, %98 : vector<8x1xf32>
    %cst_29 = arith.constant 0.000000e+00 : f32
    %102 = vector.broadcast %cst_29 : f32 to vector<8x1xf32>
    %103 = arith.select %93, %102, %101 : vector<8x1xi1>, vector<8x1xf32>
    %cst_30 = arith.constant 1.000000e+00 : f32
    %104 = vector.broadcast %cst_30 : f32 to vector<8x1xf32>
    %105 = arith.select %91, %104, %103 : vector<8x1xi1>, vector<8x1xf32>
    %cst_31 = arith.constant 1.000000e+00 : f32
    %106 = vector.broadcast %cst_31 : f32 to vector<8x1xf32>
    %107 = arith.subf %106, %105 : vector<8x1xf32>
    %c0_32 = arith.constant 0 : index
    %c1 = arith.constant 1 : index
    %108 = vector.load %arg3[%c0_32, %c1] : memref<8x6xf32, #tpu.memory_space<vmem>>, vector<8x1xf32>
    %109 = arith.cmpf olt, %108, %105 : vector<8x1xf32>
    %110 = arith.andi %31, %109 : vector<8x1xi1>
    %cst_33 = arith.constant dense<true> : vector<8x1xi1>
    %111 = arith.xori %109, %cst_33 : vector<8x1xi1>
    %112 = arith.andi %31, %111 : vector<8x1xi1>
    %cst_34 = arith.constant 3.000000e+00 : f32
    %113 = vector.broadcast %cst_34 : f32 to vector<8x1xf32>
    %114 = arith.minimumf %89, %113 : vector<8x1xf32>
    %cst_35 = arith.constant 3.000000e+00 : f32
    %115 = vector.broadcast %cst_35 : f32 to vector<8x1xf32>
    %116 = arith.maximumf %88, %115 : vector<8x1xf32>
    %117 = arith.addf %88, %114 : vector<8x1xf32>
    %cst_36 = arith.constant 5.000000e-01 : f32
    %118 = vector.broadcast %cst_36 : f32 to vector<8x1xf32>
    %119 = arith.mulf %117, %118 : vector<8x1xf32>
    %120 = arith.subf %114, %88 : vector<8x1xf32>
    %cst_37 = arith.constant 5.000000e-01 : f32
    %121 = vector.broadcast %cst_37 : f32 to vector<8x1xf32>
    %122 = arith.mulf %120, %121 : vector<8x1xf32>
    %123 = arith.addf %116, %89 : vector<8x1xf32>
    %cst_38 = arith.constant 5.000000e-01 : f32
    %124 = vector.broadcast %cst_38 : f32 to vector<8x1xf32>
    %125 = arith.mulf %123, %124 : vector<8x1xf32>
    %126 = arith.subf %89, %116 : vector<8x1xf32>
    %cst_39 = arith.constant 5.000000e-01 : f32
    %127 = vector.broadcast %cst_39 : f32 to vector<8x1xf32>
    %128 = arith.mulf %126, %127 : vector<8x1xf32>
    %129 = vector.shape_cast %125 : vector<8x1xf32> to vector<8x1xf32>
    %130 = vector.broadcast %129 : vector<8x1xf32> to vector<8x32xf32>
    %131 = arith.select %2, %130, %82 : vector<8x32xi1>, vector<8x32xf32>
    %132 = vector.shape_cast %112 : vector<8x1xi1> to vector<8x1xi1>
    %133 = vector.broadcast %132 : vector<8x1xi1> to vector<8x32xi1>
    %134 = arith.select %133, %131, %55 : vector<8x32xi1>, vector<8x32xf32>
    %135 = vector.shape_cast %128 : vector<8x1xf32> to vector<8x1xf32>
    %136 = vector.broadcast %135 : vector<8x1xf32> to vector<8x32xf32>
    %137 = arith.select %2, %136, %85 : vector<8x32xi1>, vector<8x32xf32>
    %138 = vector.shape_cast %112 : vector<8x1xi1> to vector<8x1xi1>
    %139 = vector.broadcast %138 : vector<8x1xi1> to vector<8x32xi1>
    %140 = arith.select %139, %137, %61 : vector<8x32xi1>, vector<8x32xf32>
    %cst_40 = arith.constant 9.99999968E-21 : f32
    %141 = vector.broadcast %cst_40 : f32 to vector<8x1xf32>
    %142 = arith.maximumf %105, %141 : vector<8x1xf32>
    %143 = math.log %142 : vector<8x1xf32>
    %cst_41 = arith.constant 9.99999968E-21 : f32
    %144 = vector.broadcast %cst_41 : f32 to vector<8x1xf32>
    %145 = arith.maximumf %107, %144 : vector<8x1xf32>
    %146 = math.log %145 : vector<8x1xf32>
    %cst_42 = arith.constant 0.000000e+00 : f32
    %147 = vector.broadcast %cst_42 : f32 to vector<8x1xf32>
    %148 = arith.select %112, %146, %147 : vector<8x1xi1>, vector<8x1xf32>
    %149 = arith.select %110, %143, %148 : vector<8x1xi1>, vector<8x1xf32>
    %150 = arith.addf %71, %149 : vector<8x1xf32>
    %cst_43 = arith.constant 1.000000e+00 : f32
    %151 = vector.broadcast %cst_43 : f32 to vector<8x1xf32>
    %152 = arith.subf %119, %151 : vector<8x1xf32>
    %153 = vector.shape_cast %152 : vector<8x1xf32> to vector<8x1xf32>
    %154 = vector.broadcast %153 : vector<8x1xf32> to vector<8x32xf32>
    %155 = arith.select %2, %154, %82 : vector<8x32xi1>, vector<8x32xf32>
    %156 = vector.shape_cast %122 : vector<8x1xf32> to vector<8x1xf32>
    %157 = vector.broadcast %156 : vector<8x1xf32> to vector<8x32xf32>
    %158 = arith.select %2, %157, %85 : vector<8x32xi1>, vector<8x32xf32>
    %159 = vector.shape_cast %110 : vector<8x1xi1> to vector<8x1xi1>
    %160 = vector.broadcast %159 : vector<8x1xi1> to vector<8x32xi1>
    %161 = arith.select %160, %155, %82 : vector<8x32xi1>, vector<8x32xf32>
    %162 = vector.shape_cast %110 : vector<8x1xi1> to vector<8x1xi1>
    %163 = vector.broadcast %162 : vector<8x1xi1> to vector<8x32xi1>
    %164 = arith.select %163, %158, %85 : vector<8x32xi1>, vector<8x32xf32>
    %165 = vector.extract_strided_slice %161 {offsets = [0, 0], sizes = [8, 1], strides = [1, 1]} : vector<8x32xf32> to vector<8x1xf32>
    %166 = vector.extract_strided_slice %164 {offsets = [0, 0], sizes = [8, 1], strides = [1, 1]} : vector<8x32xf32> to vector<8x1xf32>
    %167 = arith.subf %165, %166 : vector<8x1xf32>
    %168 = arith.addf %165, %166 : vector<8x1xf32>
    %cst_44 = arith.constant 3.000000e+00 : f32
    %169 = vector.broadcast %cst_44 : f32 to vector<8x1xf32>
    %170 = arith.cmpf ole, %168, %169 : vector<8x1xf32>
    %cst_45 = arith.constant 3.000000e+00 : f32
    %171 = vector.broadcast %cst_45 : f32 to vector<8x1xf32>
    %172 = arith.cmpf ogt, %167, %171 : vector<8x1xf32>
    %173 = arith.subf %168, %167 : vector<8x1xf32>
    %cst_46 = arith.constant 0.000000e+00 : f32
    %174 = vector.broadcast %cst_46 : f32 to vector<8x1xf32>
    %175 = arith.cmpf oeq, %173, %174 : vector<8x1xf32>
    %cst_47 = arith.constant 1.000000e+00 : f32
    %176 = vector.broadcast %cst_47 : f32 to vector<8x1xf32>
    %177 = arith.select %175, %176, %173 : vector<8x1xi1>, vector<8x1xf32>
    %cst_48 = arith.constant 3.000000e+00 : f32
    %178 = vector.broadcast %cst_48 : f32 to vector<8x1xf32>
    %179 = arith.subf %178, %167 : vector<8x1xf32>
    %180 = arith.divf %179, %177 : vector<8x1xf32>
    %cst_49 = arith.constant 0.000000e+00 : f32
    %181 = vector.broadcast %cst_49 : f32 to vector<8x1xf32>
    %182 = arith.select %172, %181, %180 : vector<8x1xi1>, vector<8x1xf32>
    %cst_50 = arith.constant 1.000000e+00 : f32
    %183 = vector.broadcast %cst_50 : f32 to vector<8x1xf32>
    %184 = arith.select %170, %183, %182 : vector<8x1xi1>, vector<8x1xf32>
    %cst_51 = arith.constant 1.000000e+00 : f32
    %185 = vector.broadcast %cst_51 : f32 to vector<8x1xf32>
    %186 = arith.subf %185, %184 : vector<8x1xf32>
    %c0_52 = arith.constant 0 : index
    %c2 = arith.constant 2 : index
    %187 = vector.load %arg3[%c0_52, %c2] : memref<8x6xf32, #tpu.memory_space<vmem>>, vector<8x1xf32>
    %188 = arith.cmpf olt, %187, %184 : vector<8x1xf32>
    %189 = arith.andi %110, %188 : vector<8x1xi1>
    %cst_53 = arith.constant dense<true> : vector<8x1xi1>
    %190 = arith.xori %188, %cst_53 : vector<8x1xi1>
    %191 = arith.andi %110, %190 : vector<8x1xi1>
    %cst_54 = arith.constant 3.000000e+00 : f32
    %192 = vector.broadcast %cst_54 : f32 to vector<8x1xf32>
    %193 = arith.minimumf %168, %192 : vector<8x1xf32>
    %cst_55 = arith.constant 3.000000e+00 : f32
    %194 = vector.broadcast %cst_55 : f32 to vector<8x1xf32>
    %195 = arith.maximumf %167, %194 : vector<8x1xf32>
    %196 = arith.addf %167, %193 : vector<8x1xf32>
    %cst_56 = arith.constant 5.000000e-01 : f32
    %197 = vector.broadcast %cst_56 : f32 to vector<8x1xf32>
    %198 = arith.mulf %196, %197 : vector<8x1xf32>
    %199 = arith.subf %193, %167 : vector<8x1xf32>
    %cst_57 = arith.constant 5.000000e-01 : f32
    %200 = vector.broadcast %cst_57 : f32 to vector<8x1xf32>
    %201 = arith.mulf %199, %200 : vector<8x1xf32>
    %202 = arith.addf %195, %168 : vector<8x1xf32>
    %cst_58 = arith.constant 5.000000e-01 : f32
    %203 = vector.broadcast %cst_58 : f32 to vector<8x1xf32>
    %204 = arith.mulf %202, %203 : vector<8x1xf32>
    %205 = arith.subf %168, %195 : vector<8x1xf32>
    %cst_59 = arith.constant 5.000000e-01 : f32
    %206 = vector.broadcast %cst_59 : f32 to vector<8x1xf32>
    %207 = arith.mulf %205, %206 : vector<8x1xf32>
    %208 = vector.shape_cast %204 : vector<8x1xf32> to vector<8x1xf32>
    %209 = vector.broadcast %208 : vector<8x1xf32> to vector<8x32xf32>
    %210 = arith.select %2, %209, %161 : vector<8x32xi1>, vector<8x32xf32>
    %211 = vector.shape_cast %191 : vector<8x1xi1> to vector<8x1xi1>
    %212 = vector.broadcast %211 : vector<8x1xi1> to vector<8x32xi1>
    %213 = arith.select %212, %210, %134 : vector<8x32xi1>, vector<8x32xf32>
    %214 = vector.shape_cast %207 : vector<8x1xf32> to vector<8x1xf32>
    %215 = vector.broadcast %214 : vector<8x1xf32> to vector<8x32xf32>
    %216 = arith.select %2, %215, %164 : vector<8x32xi1>, vector<8x32xf32>
    %217 = vector.shape_cast %191 : vector<8x1xi1> to vector<8x1xi1>
    %218 = vector.broadcast %217 : vector<8x1xi1> to vector<8x32xi1>
    %219 = arith.select %218, %216, %140 : vector<8x32xi1>, vector<8x32xf32>
    %cst_60 = arith.constant 9.99999968E-21 : f32
    %220 = vector.broadcast %cst_60 : f32 to vector<8x1xf32>
    %221 = arith.maximumf %184, %220 : vector<8x1xf32>
    %222 = math.log %221 : vector<8x1xf32>
    %cst_61 = arith.constant 9.99999968E-21 : f32
    %223 = vector.broadcast %cst_61 : f32 to vector<8x1xf32>
    %224 = arith.maximumf %186, %223 : vector<8x1xf32>
    %225 = math.log %224 : vector<8x1xf32>
    %cst_62 = arith.constant 0.000000e+00 : f32
    %226 = vector.broadcast %cst_62 : f32 to vector<8x1xf32>
    %227 = arith.select %191, %225, %226 : vector<8x1xi1>, vector<8x1xf32>
    %228 = arith.select %189, %222, %227 : vector<8x1xi1>, vector<8x1xf32>
    %229 = arith.addf %150, %228 : vector<8x1xf32>
    %cst_63 = arith.constant 1.000000e+00 : f32
    %230 = vector.broadcast %cst_63 : f32 to vector<8x1xf32>
    %231 = arith.subf %198, %230 : vector<8x1xf32>
    %232 = vector.shape_cast %231 : vector<8x1xf32> to vector<8x1xf32>
    %233 = vector.broadcast %232 : vector<8x1xf32> to vector<8x32xf32>
    %234 = arith.select %2, %233, %161 : vector<8x32xi1>, vector<8x32xf32>
    %235 = vector.shape_cast %201 : vector<8x1xf32> to vector<8x1xf32>
    %236 = vector.broadcast %235 : vector<8x1xf32> to vector<8x32xf32>
    %237 = arith.select %2, %236, %164 : vector<8x32xi1>, vector<8x32xf32>
    %238 = vector.shape_cast %189 : vector<8x1xi1> to vector<8x1xi1>
    %239 = vector.broadcast %238 : vector<8x1xi1> to vector<8x32xi1>
    %240 = arith.select %239, %234, %161 : vector<8x32xi1>, vector<8x32xf32>
    %241 = vector.shape_cast %189 : vector<8x1xi1> to vector<8x1xi1>
    %242 = vector.broadcast %241 : vector<8x1xi1> to vector<8x32xi1>
    %243 = arith.select %242, %237, %164 : vector<8x32xi1>, vector<8x32xf32>
    %244 = vector.extract_strided_slice %240 {offsets = [0, 0], sizes = [8, 1], strides = [1, 1]} : vector<8x32xf32> to vector<8x1xf32>
    %245 = vector.extract_strided_slice %243 {offsets = [0, 0], sizes = [8, 1], strides = [1, 1]} : vector<8x32xf32> to vector<8x1xf32>
    %246 = arith.subf %244, %245 : vector<8x1xf32>
    %247 = arith.addf %244, %245 : vector<8x1xf32>
    %cst_64 = arith.constant 3.000000e+00 : f32
    %248 = vector.broadcast %cst_64 : f32 to vector<8x1xf32>
    %249 = arith.cmpf ole, %247, %248 : vector<8x1xf32>
    %cst_65 = arith.constant 3.000000e+00 : f32
    %250 = vector.broadcast %cst_65 : f32 to vector<8x1xf32>
    %251 = arith.cmpf ogt, %246, %250 : vector<8x1xf32>
    %252 = arith.subf %247, %246 : vector<8x1xf32>
    %cst_66 = arith.constant 0.000000e+00 : f32
    %253 = vector.broadcast %cst_66 : f32 to vector<8x1xf32>
    %254 = arith.cmpf oeq, %252, %253 : vector<8x1xf32>
    %cst_67 = arith.constant 1.000000e+00 : f32
    %255 = vector.broadcast %cst_67 : f32 to vector<8x1xf32>
    %256 = arith.select %254, %255, %252 : vector<8x1xi1>, vector<8x1xf32>
    %cst_68 = arith.constant 3.000000e+00 : f32
    %257 = vector.broadcast %cst_68 : f32 to vector<8x1xf32>
    %258 = arith.subf %257, %246 : vector<8x1xf32>
    %259 = arith.divf %258, %256 : vector<8x1xf32>
    %cst_69 = arith.constant 0.000000e+00 : f32
    %260 = vector.broadcast %cst_69 : f32 to vector<8x1xf32>
    %261 = arith.select %251, %260, %259 : vector<8x1xi1>, vector<8x1xf32>
    %cst_70 = arith.constant 1.000000e+00 : f32
    %262 = vector.broadcast %cst_70 : f32 to vector<8x1xf32>
    %263 = arith.select %249, %262, %261 : vector<8x1xi1>, vector<8x1xf32>
    %cst_71 = arith.constant 1.000000e+00 : f32
    %264 = vector.broadcast %cst_71 : f32 to vector<8x1xf32>
    %265 = arith.subf %264, %263 : vector<8x1xf32>
    %c0_72 = arith.constant 0 : index
    %c3 = arith.constant 3 : index
    %266 = vector.load %arg3[%c0_72, %c3] : memref<8x6xf32, #tpu.memory_space<vmem>>, vector<8x1xf32>
    %267 = arith.cmpf olt, %266, %263 : vector<8x1xf32>
    %268 = arith.andi %189, %267 : vector<8x1xi1>
    %cst_73 = arith.constant dense<true> : vector<8x1xi1>
    %269 = arith.xori %267, %cst_73 : vector<8x1xi1>
    %270 = arith.andi %189, %269 : vector<8x1xi1>
    %cst_74 = arith.constant 3.000000e+00 : f32
    %271 = vector.broadcast %cst_74 : f32 to vector<8x1xf32>
    %272 = arith.minimumf %247, %271 : vector<8x1xf32>
    %cst_75 = arith.constant 3.000000e+00 : f32
    %273 = vector.broadcast %cst_75 : f32 to vector<8x1xf32>
    %274 = arith.maximumf %246, %273 : vector<8x1xf32>
    %275 = arith.addf %246, %272 : vector<8x1xf32>
    %cst_76 = arith.constant 5.000000e-01 : f32
    %276 = vector.broadcast %cst_76 : f32 to vector<8x1xf32>
    %277 = arith.mulf %275, %276 : vector<8x1xf32>
    %278 = arith.subf %272, %246 : vector<8x1xf32>
    %cst_77 = arith.constant 5.000000e-01 : f32
    %279 = vector.broadcast %cst_77 : f32 to vector<8x1xf32>
    %280 = arith.mulf %278, %279 : vector<8x1xf32>
    %281 = arith.addf %274, %247 : vector<8x1xf32>
    %cst_78 = arith.constant 5.000000e-01 : f32
    %282 = vector.broadcast %cst_78 : f32 to vector<8x1xf32>
    %283 = arith.mulf %281, %282 : vector<8x1xf32>
    %284 = arith.subf %247, %274 : vector<8x1xf32>
    %cst_79 = arith.constant 5.000000e-01 : f32
    %285 = vector.broadcast %cst_79 : f32 to vector<8x1xf32>
    %286 = arith.mulf %284, %285 : vector<8x1xf32>
    %287 = vector.shape_cast %283 : vector<8x1xf32> to vector<8x1xf32>
    %288 = vector.broadcast %287 : vector<8x1xf32> to vector<8x32xf32>
    %289 = arith.select %2, %288, %240 : vector<8x32xi1>, vector<8x32xf32>
    %290 = vector.shape_cast %270 : vector<8x1xi1> to vector<8x1xi1>
    %291 = vector.broadcast %290 : vector<8x1xi1> to vector<8x32xi1>
    %292 = arith.select %291, %289, %213 : vector<8x32xi1>, vector<8x32xf32>
    %293 = vector.shape_cast %286 : vector<8x1xf32> to vector<8x1xf32>
    %294 = vector.broadcast %293 : vector<8x1xf32> to vector<8x32xf32>
    %295 = arith.select %2, %294, %243 : vector<8x32xi1>, vector<8x32xf32>
    %296 = vector.shape_cast %270 : vector<8x1xi1> to vector<8x1xi1>
    %297 = vector.broadcast %296 : vector<8x1xi1> to vector<8x32xi1>
    %298 = arith.select %297, %295, %219 : vector<8x32xi1>, vector<8x32xf32>
    %cst_80 = arith.constant 9.99999968E-21 : f32
    %299 = vector.broadcast %cst_80 : f32 to vector<8x1xf32>
    %300 = arith.maximumf %263, %299 : vector<8x1xf32>
    %301 = math.log %300 : vector<8x1xf32>
    %cst_81 = arith.constant 9.99999968E-21 : f32
    %302 = vector.broadcast %cst_81 : f32 to vector<8x1xf32>
    %303 = arith.maximumf %265, %302 : vector<8x1xf32>
    %304 = math.log %303 : vector<8x1xf32>
    %cst_82 = arith.constant 0.000000e+00 : f32
    %305 = vector.broadcast %cst_82 : f32 to vector<8x1xf32>
    %306 = arith.select %270, %304, %305 : vector<8x1xi1>, vector<8x1xf32>
    %307 = arith.select %268, %301, %306 : vector<8x1xi1>, vector<8x1xf32>
    %308 = arith.addf %229, %307 : vector<8x1xf32>
    %cst_83 = arith.constant 1.000000e+00 : f32
    %309 = vector.broadcast %cst_83 : f32 to vector<8x1xf32>
    %310 = arith.subf %277, %309 : vector<8x1xf32>
    %311 = vector.shape_cast %310 : vector<8x1xf32> to vector<8x1xf32>
    %312 = vector.broadcast %311 : vector<8x1xf32> to vector<8x32xf32>
    %313 = arith.select %2, %312, %240 : vector<8x32xi1>, vector<8x32xf32>
    %314 = vector.shape_cast %280 : vector<8x1xf32> to vector<8x1xf32>
    %315 = vector.broadcast %314 : vector<8x1xf32> to vector<8x32xf32>
    %316 = arith.select %2, %315, %243 : vector<8x32xi1>, vector<8x32xf32>
    %317 = vector.shape_cast %268 : vector<8x1xi1> to vector<8x1xi1>
    %318 = vector.broadcast %317 : vector<8x1xi1> to vector<8x32xi1>
    %319 = arith.select %318, %313, %240 : vector<8x32xi1>, vector<8x32xf32>
    %320 = vector.shape_cast %268 : vector<8x1xi1> to vector<8x1xi1>
    %321 = vector.broadcast %320 : vector<8x1xi1> to vector<8x32xi1>
    %322 = arith.select %321, %316, %243 : vector<8x32xi1>, vector<8x32xf32>
    %323 = vector.extract_strided_slice %319 {offsets = [0, 0], sizes = [8, 1], strides = [1, 1]} : vector<8x32xf32> to vector<8x1xf32>
    %324 = vector.extract_strided_slice %322 {offsets = [0, 0], sizes = [8, 1], strides = [1, 1]} : vector<8x32xf32> to vector<8x1xf32>
    %325 = arith.subf %323, %324 : vector<8x1xf32>
    %326 = arith.addf %323, %324 : vector<8x1xf32>
    %cst_84 = arith.constant 3.000000e+00 : f32
    %327 = vector.broadcast %cst_84 : f32 to vector<8x1xf32>
    %328 = arith.cmpf ole, %326, %327 : vector<8x1xf32>
    %cst_85 = arith.constant 3.000000e+00 : f32
    %329 = vector.broadcast %cst_85 : f32 to vector<8x1xf32>
    %330 = arith.cmpf ogt, %325, %329 : vector<8x1xf32>
    %331 = arith.subf %326, %325 : vector<8x1xf32>
    %cst_86 = arith.constant 0.000000e+00 : f32
    %332 = vector.broadcast %cst_86 : f32 to vector<8x1xf32>
    %333 = arith.cmpf oeq, %331, %332 : vector<8x1xf32>
    %cst_87 = arith.constant 1.000000e+00 : f32
    %334 = vector.broadcast %cst_87 : f32 to vector<8x1xf32>
    %335 = arith.select %333, %334, %331 : vector<8x1xi1>, vector<8x1xf32>
    %cst_88 = arith.constant 3.000000e+00 : f32
    %336 = vector.broadcast %cst_88 : f32 to vector<8x1xf32>
    %337 = arith.subf %336, %325 : vector<8x1xf32>
    %338 = arith.divf %337, %335 : vector<8x1xf32>
    %cst_89 = arith.constant 0.000000e+00 : f32
    %339 = vector.broadcast %cst_89 : f32 to vector<8x1xf32>
    %340 = arith.select %330, %339, %338 : vector<8x1xi1>, vector<8x1xf32>
    %cst_90 = arith.constant 1.000000e+00 : f32
    %341 = vector.broadcast %cst_90 : f32 to vector<8x1xf32>
    %342 = arith.select %328, %341, %340 : vector<8x1xi1>, vector<8x1xf32>
    %cst_91 = arith.constant 1.000000e+00 : f32
    %343 = vector.broadcast %cst_91 : f32 to vector<8x1xf32>
    %344 = arith.subf %343, %342 : vector<8x1xf32>
    %c0_92 = arith.constant 0 : index
    %c4 = arith.constant 4 : index
    %345 = vector.load %arg3[%c0_92, %c4] : memref<8x6xf32, #tpu.memory_space<vmem>>, vector<8x1xf32>
    %346 = arith.cmpf olt, %345, %342 : vector<8x1xf32>
    %347 = arith.andi %268, %346 : vector<8x1xi1>
    %cst_93 = arith.constant dense<true> : vector<8x1xi1>
    %348 = arith.xori %346, %cst_93 : vector<8x1xi1>
    %349 = arith.andi %268, %348 : vector<8x1xi1>
    %cst_94 = arith.constant 3.000000e+00 : f32
    %350 = vector.broadcast %cst_94 : f32 to vector<8x1xf32>
    %351 = arith.minimumf %326, %350 : vector<8x1xf32>
    %cst_95 = arith.constant 3.000000e+00 : f32
    %352 = vector.broadcast %cst_95 : f32 to vector<8x1xf32>
    %353 = arith.maximumf %325, %352 : vector<8x1xf32>
    %354 = arith.addf %325, %351 : vector<8x1xf32>
    %cst_96 = arith.constant 5.000000e-01 : f32
    %355 = vector.broadcast %cst_96 : f32 to vector<8x1xf32>
    %356 = arith.mulf %354, %355 : vector<8x1xf32>
    %357 = arith.subf %351, %325 : vector<8x1xf32>
    %cst_97 = arith.constant 5.000000e-01 : f32
    %358 = vector.broadcast %cst_97 : f32 to vector<8x1xf32>
    %359 = arith.mulf %357, %358 : vector<8x1xf32>
    %360 = arith.addf %353, %326 : vector<8x1xf32>
    %cst_98 = arith.constant 5.000000e-01 : f32
    %361 = vector.broadcast %cst_98 : f32 to vector<8x1xf32>
    %362 = arith.mulf %360, %361 : vector<8x1xf32>
    %363 = arith.subf %326, %353 : vector<8x1xf32>
    %cst_99 = arith.constant 5.000000e-01 : f32
    %364 = vector.broadcast %cst_99 : f32 to vector<8x1xf32>
    %365 = arith.mulf %363, %364 : vector<8x1xf32>
    %366 = vector.shape_cast %362 : vector<8x1xf32> to vector<8x1xf32>
    %367 = vector.broadcast %366 : vector<8x1xf32> to vector<8x32xf32>
    %368 = arith.select %2, %367, %319 : vector<8x32xi1>, vector<8x32xf32>
    %369 = vector.shape_cast %349 : vector<8x1xi1> to vector<8x1xi1>
    %370 = vector.broadcast %369 : vector<8x1xi1> to vector<8x32xi1>
    %371 = arith.select %370, %368, %292 : vector<8x32xi1>, vector<8x32xf32>
    %372 = vector.shape_cast %365 : vector<8x1xf32> to vector<8x1xf32>
    %373 = vector.broadcast %372 : vector<8x1xf32> to vector<8x32xf32>
    %374 = arith.select %2, %373, %322 : vector<8x32xi1>, vector<8x32xf32>
    %375 = vector.shape_cast %349 : vector<8x1xi1> to vector<8x1xi1>
    %376 = vector.broadcast %375 : vector<8x1xi1> to vector<8x32xi1>
    %377 = arith.select %376, %374, %298 : vector<8x32xi1>, vector<8x32xf32>
    %cst_100 = arith.constant 9.99999968E-21 : f32
    %378 = vector.broadcast %cst_100 : f32 to vector<8x1xf32>
    %379 = arith.maximumf %342, %378 : vector<8x1xf32>
    %380 = math.log %379 : vector<8x1xf32>
    %cst_101 = arith.constant 9.99999968E-21 : f32
    %381 = vector.broadcast %cst_101 : f32 to vector<8x1xf32>
    %382 = arith.maximumf %344, %381 : vector<8x1xf32>
    %383 = math.log %382 : vector<8x1xf32>
    %cst_102 = arith.constant 0.000000e+00 : f32
    %384 = vector.broadcast %cst_102 : f32 to vector<8x1xf32>
    %385 = arith.select %349, %383, %384 : vector<8x1xi1>, vector<8x1xf32>
    %386 = arith.select %347, %380, %385 : vector<8x1xi1>, vector<8x1xf32>
    %387 = arith.addf %308, %386 : vector<8x1xf32>
    %cst_103 = arith.constant 1.000000e+00 : f32
    %388 = vector.broadcast %cst_103 : f32 to vector<8x1xf32>
    %389 = arith.subf %356, %388 : vector<8x1xf32>
    %390 = vector.shape_cast %389 : vector<8x1xf32> to vector<8x1xf32>
    %391 = vector.broadcast %390 : vector<8x1xf32> to vector<8x32xf32>
    %392 = arith.select %2, %391, %319 : vector<8x32xi1>, vector<8x32xf32>
    %393 = vector.shape_cast %359 : vector<8x1xf32> to vector<8x1xf32>
    %394 = vector.broadcast %393 : vector<8x1xf32> to vector<8x32xf32>
    %395 = arith.select %2, %394, %322 : vector<8x32xi1>, vector<8x32xf32>
    %396 = vector.shape_cast %347 : vector<8x1xi1> to vector<8x1xi1>
    %397 = vector.broadcast %396 : vector<8x1xi1> to vector<8x32xi1>
    %398 = arith.select %397, %392, %319 : vector<8x32xi1>, vector<8x32xf32>
    %399 = vector.shape_cast %347 : vector<8x1xi1> to vector<8x1xi1>
    %400 = vector.broadcast %399 : vector<8x1xi1> to vector<8x32xi1>
    %401 = arith.select %400, %395, %322 : vector<8x32xi1>, vector<8x32xf32>
    %402 = vector.extract_strided_slice %398 {offsets = [0, 0], sizes = [8, 1], strides = [1, 1]} : vector<8x32xf32> to vector<8x1xf32>
    %403 = vector.extract_strided_slice %401 {offsets = [0, 0], sizes = [8, 1], strides = [1, 1]} : vector<8x32xf32> to vector<8x1xf32>
    %404 = arith.subf %402, %403 : vector<8x1xf32>
    %405 = arith.addf %402, %403 : vector<8x1xf32>
    %cst_104 = arith.constant 3.000000e+00 : f32
    %406 = vector.broadcast %cst_104 : f32 to vector<8x1xf32>
    %407 = arith.cmpf ole, %405, %406 : vector<8x1xf32>
    %cst_105 = arith.constant 3.000000e+00 : f32
    %408 = vector.broadcast %cst_105 : f32 to vector<8x1xf32>
    %409 = arith.cmpf ogt, %404, %408 : vector<8x1xf32>
    %410 = arith.subf %405, %404 : vector<8x1xf32>
    %cst_106 = arith.constant 0.000000e+00 : f32
    %411 = vector.broadcast %cst_106 : f32 to vector<8x1xf32>
    %412 = arith.cmpf oeq, %410, %411 : vector<8x1xf32>
    %cst_107 = arith.constant 1.000000e+00 : f32
    %413 = vector.broadcast %cst_107 : f32 to vector<8x1xf32>
    %414 = arith.select %412, %413, %410 : vector<8x1xi1>, vector<8x1xf32>
    %cst_108 = arith.constant 3.000000e+00 : f32
    %415 = vector.broadcast %cst_108 : f32 to vector<8x1xf32>
    %416 = arith.subf %415, %404 : vector<8x1xf32>
    %417 = arith.divf %416, %414 : vector<8x1xf32>
    %cst_109 = arith.constant 0.000000e+00 : f32
    %418 = vector.broadcast %cst_109 : f32 to vector<8x1xf32>
    %419 = arith.select %409, %418, %417 : vector<8x1xi1>, vector<8x1xf32>
    %cst_110 = arith.constant 1.000000e+00 : f32
    %420 = vector.broadcast %cst_110 : f32 to vector<8x1xf32>
    %421 = arith.select %407, %420, %419 : vector<8x1xi1>, vector<8x1xf32>
    %cst_111 = arith.constant 1.000000e+00 : f32
    %422 = vector.broadcast %cst_111 : f32 to vector<8x1xf32>
    %423 = arith.subf %422, %421 : vector<8x1xf32>
    %c0_112 = arith.constant 0 : index
    %c5 = arith.constant 5 : index
    %424 = vector.load %arg3[%c0_112, %c5] : memref<8x6xf32, #tpu.memory_space<vmem>>, vector<8x1xf32>
    %425 = arith.cmpf olt, %424, %421 : vector<8x1xf32>
    %426 = arith.andi %347, %425 : vector<8x1xi1>
    %cst_113 = arith.constant dense<true> : vector<8x1xi1>
    %427 = arith.xori %425, %cst_113 : vector<8x1xi1>
    %428 = arith.andi %347, %427 : vector<8x1xi1>
    %cst_114 = arith.constant 3.000000e+00 : f32
    %429 = vector.broadcast %cst_114 : f32 to vector<8x1xf32>
    %430 = arith.minimumf %405, %429 : vector<8x1xf32>
    %cst_115 = arith.constant 3.000000e+00 : f32
    %431 = vector.broadcast %cst_115 : f32 to vector<8x1xf32>
    %432 = arith.maximumf %404, %431 : vector<8x1xf32>
    %433 = arith.addf %404, %430 : vector<8x1xf32>
    %cst_116 = arith.constant 5.000000e-01 : f32
    %434 = vector.broadcast %cst_116 : f32 to vector<8x1xf32>
    %435 = arith.mulf %433, %434 : vector<8x1xf32>
    %436 = arith.subf %430, %404 : vector<8x1xf32>
    %cst_117 = arith.constant 5.000000e-01 : f32
    %437 = vector.broadcast %cst_117 : f32 to vector<8x1xf32>
    %438 = arith.mulf %436, %437 : vector<8x1xf32>
    %439 = arith.addf %432, %405 : vector<8x1xf32>
    %cst_118 = arith.constant 5.000000e-01 : f32
    %440 = vector.broadcast %cst_118 : f32 to vector<8x1xf32>
    %441 = arith.mulf %439, %440 : vector<8x1xf32>
    %442 = arith.subf %405, %432 : vector<8x1xf32>
    %cst_119 = arith.constant 5.000000e-01 : f32
    %443 = vector.broadcast %cst_119 : f32 to vector<8x1xf32>
    %444 = arith.mulf %442, %443 : vector<8x1xf32>
    %445 = vector.shape_cast %441 : vector<8x1xf32> to vector<8x1xf32>
    %446 = vector.broadcast %445 : vector<8x1xf32> to vector<8x32xf32>
    %447 = arith.select %2, %446, %398 : vector<8x32xi1>, vector<8x32xf32>
    %448 = vector.shape_cast %428 : vector<8x1xi1> to vector<8x1xi1>
    %449 = vector.broadcast %448 : vector<8x1xi1> to vector<8x32xi1>
    %450 = arith.select %449, %447, %371 : vector<8x32xi1>, vector<8x32xf32>
    %451 = vector.shape_cast %444 : vector<8x1xf32> to vector<8x1xf32>
    %452 = vector.broadcast %451 : vector<8x1xf32> to vector<8x32xf32>
    %453 = arith.select %2, %452, %401 : vector<8x32xi1>, vector<8x32xf32>
    %454 = vector.shape_cast %428 : vector<8x1xi1> to vector<8x1xi1>
    %455 = vector.broadcast %454 : vector<8x1xi1> to vector<8x32xi1>
    %456 = arith.select %455, %453, %377 : vector<8x32xi1>, vector<8x32xf32>
    %cst_120 = arith.constant 9.99999968E-21 : f32
    %457 = vector.broadcast %cst_120 : f32 to vector<8x1xf32>
    %458 = arith.maximumf %421, %457 : vector<8x1xf32>
    %459 = math.log %458 : vector<8x1xf32>
    %cst_121 = arith.constant 9.99999968E-21 : f32
    %460 = vector.broadcast %cst_121 : f32 to vector<8x1xf32>
    %461 = arith.maximumf %423, %460 : vector<8x1xf32>
    %462 = math.log %461 : vector<8x1xf32>
    %cst_122 = arith.constant 0.000000e+00 : f32
    %463 = vector.broadcast %cst_122 : f32 to vector<8x1xf32>
    %464 = arith.select %428, %462, %463 : vector<8x1xi1>, vector<8x1xf32>
    %465 = arith.select %426, %459, %464 : vector<8x1xi1>, vector<8x1xf32>
    %466 = arith.addf %387, %465 : vector<8x1xf32>
    %cst_123 = arith.constant 1.000000e+00 : f32
    %467 = vector.broadcast %cst_123 : f32 to vector<8x1xf32>
    %468 = arith.subf %435, %467 : vector<8x1xf32>
    %469 = vector.shape_cast %468 : vector<8x1xf32> to vector<8x1xf32>
    %470 = vector.broadcast %469 : vector<8x1xf32> to vector<8x32xf32>
    %471 = arith.select %2, %470, %398 : vector<8x32xi1>, vector<8x32xf32>
    %472 = vector.shape_cast %438 : vector<8x1xf32> to vector<8x1xf32>
    %473 = vector.broadcast %472 : vector<8x1xf32> to vector<8x32xf32>
    %474 = arith.select %2, %473, %401 : vector<8x32xi1>, vector<8x32xf32>
    %475 = vector.shape_cast %426 : vector<8x1xi1> to vector<8x1xi1>
    %476 = vector.broadcast %475 : vector<8x1xi1> to vector<8x32xi1>
    %477 = arith.select %476, %471, %398 : vector<8x32xi1>, vector<8x32xf32>
    %478 = vector.shape_cast %426 : vector<8x1xi1> to vector<8x1xi1>
    %479 = vector.broadcast %478 : vector<8x1xi1> to vector<8x32xi1>
    %480 = arith.select %479, %474, %401 : vector<8x32xi1>, vector<8x32xf32>
    %481 = vector.shape_cast %426 : vector<8x1xi1> to vector<8x1xi1>
    %482 = vector.broadcast %481 : vector<8x1xi1> to vector<8x32xi1>
    %483 = arith.select %482, %477, %450 : vector<8x32xi1>, vector<8x32xf32>
    %c0_124 = arith.constant 0 : index
    %c0_125 = arith.constant 0 : index
    %484 = vector.load %arg4[%c0_124, %c0_125] : memref<8x32xf32, #tpu.memory_space<vmem>>, vector<8x32xf32>
    tpu.vector_store %arg4[%c0_124, %c0_125], %483 {strides = array<i32>} : memref<8x32xf32, #tpu.memory_space<vmem>>, vector<8x32xf32>,
    %485 = vector.shape_cast %426 : vector<8x1xi1> to vector<8x1xi1>
    %486 = vector.broadcast %485 : vector<8x1xi1> to vector<8x32xi1>
    %487 = arith.select %486, %480, %456 : vector<8x32xi1>, vector<8x32xf32>
    %c0_126 = arith.constant 0 : index
    %c0_127 = arith.constant 0 : index
    %488 = vector.load %arg5[%c0_126, %c0_127] : memref<8x32xf32, #tpu.memory_space<vmem>>, vector<8x32xf32>
    tpu.vector_store %arg5[%c0_126, %c0_127], %487 {strides = array<i32>} : memref<8x32xf32, #tpu.memory_space<vmem>>, vector<8x32xf32>,
    %c0_128 = arith.constant 0 : index
    %c0_129 = arith.constant 0 : index
    %489 = vector.load %arg6[%c0_128, %c0_129] : memref<8x1xf32, #tpu.memory_space<vmem>>, vector<8x1xf32>
    tpu.vector_store %arg6[%c0_128, %c0_129], %466 {strides = array<i32>} : memref<8x1xf32, #tpu.memory_space<vmem>>, vector<8x1xf32>,
    return
  }
  func.func @transform_0(%arg0: i32) -> (i32, i32) {
    %c0_i32 = arith.constant 0 : i32
    %c0_i32_0 = arith.constant 0 : i32
    return %arg0, %c0_i32 : i32, i32
  }
  func.func @transform_1(%arg0: i32) -> (i32, i32) {
    %c0_i32 = arith.constant 0 : i32
    %c0_i32_0 = arith.constant 0 : i32
    return %arg0, %c0_i32 : i32, i32
  }
  func.func @transform_2(%arg0: i32) -> (i32, i32) {
    %c0_i32 = arith.constant 0 : i32
    %c0_i32_0 = arith.constant 0 : i32
    return %arg0, %c0_i32 : i32, i32
  }
  func.func @transform_3(%arg0: i32) -> (i32, i32) {
    %c0_i32 = arith.constant 0 : i32
    %c0_i32_0 = arith.constant 0 : i32
    return %arg0, %c0_i32 : i32, i32
  }
  func.func @transform_4(%arg0: i32) -> (i32, i32) {
    %c0_i32 = arith.constant 0 : i32
    %c0_i32_0 = arith.constant 0 : i32
    return %arg0, %c0_i32 : i32, i32
  }
  func.func @transform_5(%arg0: i32) -> (i32, i32) {
    %c0_i32 = arith.constant 0 : i32
    %c0_i32_0 = arith.constant 0 : i32
    return %arg0, %c0_i32 : i32, i32
  }
}

</mosaic_0001>

<llo_original>
// kernel: forward.1
$region0: #{forward.1}
  #allocation0 [shape = 'u32[]', space=smem, size = 0x4, offset = 0x4, fixed_abs, tag = 'smem constant byte address 0x4 - core index']
  #allocation1 [shape = 'u32[144,128]{1,0:T(1,128)}', space=vmem, size = 0x12000, scoped, tag = 'internal scratch']
  %s0 = inlined_call_operand.vmem [shape: f32[8,32], index: 0, kind: input, shape index: {}]
  %s1 = inlined_call_operand.vmem [shape: f32[8,32], index: 1, kind: input, shape index: {}]
  %s2 = inlined_call_operand.vmem [shape: f32[8,6], index: 2, kind: input, shape index: {}]
  %s3 = inlined_call_operand.hbm [shape: f32[8,32], index: 3, kind: output, shape index: {0}]
  %s4 = inlined_call_operand.hbm [shape: f32[8,32], index: 4, kind: output, shape index: {1}]
  %s5 = inlined_call_operand.vmem [shape: f32[8,1], index: 5, kind: output, shape index: {2}]
  %6 = xla_tuple %s3, %s4, %s5
  %s7 = sld [smem:[#allocation0]]
  $region38: #{forward.1} parent=0
    _
  %s9 = ssub.s32 1, %s7
  %s10 = scalar_select 0, %s9, %s7
  $region1: #{forward.1} parent=0
    #allocation2 [shape = 'u8[4096]{0}', space=vmem, size = 0x1000, scoped, tag = 'output window, operand 0, single buffered']
    #allocation3 [shape = 's32[1]{0}', space=sflag, size = 0x4, scoped, tag = 'scoped memory for forward.1']
    #allocation4 [shape = 'u8[4096]{0}', space=vmem, size = 0x1000, scoped, tag = 'output window, operand 1, single buffered']
    #allocation5 [shape = 's32[1]{0}', space=sflag, size = 0x4, scoped, tag = 'scoped memory for forward.1']
    %11 = vsyncpa [#allocation3], 0
    %12 = vsyncpa [#allocation5], 0
    // Predicated region
    $region2: #{forward.1} parent=1 // pred_check
      _
    $region3: #{forward.1} parent=1 // pred_check_branch
      %14 = sbr.rel (0) target = $region5
    $region4: #{forward.1} parent=1 // pred_region
      _
    $region5: #{forward.1} parent=1 // pred_fallthru
      _
    // Predicated region
    $region6: #{forward.1} parent=1 // pred_check
      _
    $region7: #{forward.1} parent=1 // pred_check_branch
      %16 = sbr.rel (0) target = $region9
    $region8: #{forward.1} parent=1 // pred_region
      _
    $region9: #{forward.1} parent=1 // pred_fallthru
      _
    // Predicated region
    $region10: #{forward.1} parent=1 // pred_check
      _
    $region11: #{forward.1} parent=1 // pred_check_branch
      %18 = sbr.rel (0) target = $region13
    $region12: #{forward.1} parent=1 // pred_region
      _
    $region13: #{forward.1} parent=1 // pred_fallthru
      _
    %v19 = vlaneseq
    %v20 = vand.u32 %v19, 127
    %vm21 = vcmp.eq.s32.totalorder %v20, 0
    %v22 = vld [vmem:[%s0] sm:$0xff]
    %v23 = vld [vmem:[%s1] sm:$0xff]
    %v24 = vsub.f32 %v22, %v23
    %v25 = vadd.f32 %v22, %v23
    %vm26 = vcmp.le.f32.partialorder %v25, 3.0
    %vm27 = vcmp.gt.f32.partialorder %v24, 3.0
    %v28 = vsub.f32 %v25, %v24
    %vm29 = vcmp.eq.f32.partialorder %v28, 0.0
    %v30 = vsel %vm29, 1.0, %v28
    %v31 = vsub.f32 3.0, %v24
    %v32 = vrcp.pop %v30
    %v33 = vmul.f32 %v31, %v32
    %v34 = vsel %vm27, 0.0, %v33
    %v35 = vsel %vm26, 1.0, %v34
    %v36 = vsub.f32 1.0, %v35
    %v37 = vld [vmem:[%s2] sm:$0xff]
    %vm38 = vcmp.lt.f32.partialorder %v37, %v35
    %vm39 = vmxor %vm38, 1
    %v40 = vmin.f32 %v25, 3.0
    %v41 = vmax.f32 %v24, 3.0
    %v42 = vadd.f32 %v24, %v40
    %v43 = vmul.f32 %v42, 0.5
    %v44 = vsub.f32 %v40, %v24
    %v45 = vmul.f32 %v44, 0.5
    %v46 = vadd.f32 %v41, %v25
    %v47 = vmul.f32 %v46, 0.5
    %v48 = vsub.f32 %v25, %v41
    %v49 = vmul.f32 %v48, 0.5
    %51 = vset.pattern.permute.xlu0 0
    %52 = vperm.xlu0 %51, %v47
    %v53 = vpop.permute.xlu0 %52
    %v55 = vsel %vm21, %v53, %v22
    %v56 = vsel %vm39, 1, 0
    %57 = vset.pattern.permute.xlu0 0
    %58 = vperm.xlu0 %57, %v56
    %v59 = vpop.permute.xlu0 %58
    %vm60 = vcmp.eq.s32.totalorder %v59, 1
    %v61 = vsel %vm60, %v55, %v22
    %63 = vset.pattern.permute.xlu0 0
    %64 = vperm.xlu0 %63, %v49
    %v65 = vpop.permute.xlu0 %64
    %v67 = vsel %vm21, %v65, %v23
    %v68 = vsel %vm60, %v67, %v23
    %v69 = vmax.f32 %v35, 1e-20
    %v70 = vlog2.pop %v69
    %v71 = vmul.f32 %v70, 0.6931472
    %v72 = vmax.f32 %v36, 1e-20
    %v73 = vlog2.pop %v72
    %v74 = vmul.f32 %v73, 0.6931472
    %v75 = vsel %vm39, %v74, 0.0
    %v76 = vsel %vm38, %v71, %v75
    %v77 = vadd.f32 %v76, 0.0
    %v78 = vsub.f32 %v43, 1.0
    %80 = vset.pattern.permute.xlu0 0
    %81 = vperm.xlu0 %80, %v78
    %v82 = vpop.permute.xlu0 %81
    %v84 = vsel %vm21, %v82, %v22
    %86 = vset.pattern.permute.xlu0 0
    %87 = vperm.xlu0 %86, %v45
    %v88 = vpop.permute.xlu0 %87
    %v90 = vsel %vm21, %v88, %v23
    %v91 = vsel %vm38, 1, 0
    %92 = vset.pattern.permute.xlu0 0
    %93 = vperm.xlu0 %92, %v91
    %v94 = vpop.permute.xlu0 %93
    %vm95 = vcmp.eq.s32.totalorder %v94, 1
    %v96 = vsel %vm95, %v84, %v22
    %v97 = vsel %vm95, %v90, %v23
    %v98 = vsub.f32 %v96, %v97
    %v99 = vadd.f32 %v96, %v97
    %vm100 = vcmp.le.f32.partialorder %v99, 3.0
    %vm101 = vcmp.gt.f32.partialorder %v98, 3.0
    %v102 = vsub.f32 %v99, %v98
    %vm103 = vcmp.eq.f32.partialorder %v102, 0.0
    %v104 = vsel %vm103, 1.0, %v102
    %v105 = vsub.f32 3.0, %v98
    %v106 = vrcp.pop %v104
    %v107 = vmul.f32 %v105, %v106
    %v108 = vsel %vm101, 0.0, %v107
    %v109 = vsel %vm100, 1.0, %v108
    %v110 = vsub.f32 1.0, %v109
    %112 = vrot.lane.b32.xlu0 %v109, 1
    %v113 = vpop.permute.xlu0 %112
    %vm115 = vcmp.lt.f32.partialorder %v37, %v113
    %v116 = vsel %vm115, 1, 0
    %117 = vrot.lane.b32.xlu0 %v116, 127
    %v118 = vpop.permute.xlu0 %117
    %vm119 = vcmp.ne.s32.totalorder %v118, 0
    %vm120 = vmand %vm38, %vm119
    %vm121 = vmxor %vm115, 1
    %v122 = vsel %vm121, 1, 0
    %123 = vrot.lane.b32.xlu0 %v122, 127
    %v124 = vpop.permute.xlu0 %123
    %vm125 = vcmp.ne.s32.totalorder %v124, 0
    %vm126 = vmand %vm38, %vm125
    %v127 = vmin.f32 %v99, 3.0
    %v128 = vmax.f32 %v98, 3.0
    %v129 = vadd.f32 %v98, %v127
    %v130 = vmul.f32 %v129, 0.5
    %v131 = vsub.f32 %v127, %v98
    %v132 = vmul.f32 %v131, 0.5
    %v133 = vadd.f32 %v128, %v99
    %v134 = vmul.f32 %v133, 0.5
    %v135 = vsub.f32 %v99, %v128
    %v136 = vmul.f32 %v135, 0.5
    %138 = vset.pattern.permute.xlu0 0
    %139 = vperm.xlu0 %138, %v134
    %v140 = vpop.permute.xlu0 %139
    %v142 = vsel %vm21, %v140, %v96
    %v143 = vsel %vm126, 1, 0
    %144 = vset.pattern.permute.xlu0 0
    %145 = vperm.xlu0 %144, %v143
    %v146 = vpop.permute.xlu0 %145
    %vm147 = vcmp.eq.s32.totalorder %v146, 1
    %v148 = vsel %vm147, %v142, %v61
    %150 = vset.pattern.permute.xlu0 0
    %151 = vperm.xlu0 %150, %v136
    %v152 = vpop.permute.xlu0 %151
    %v154 = vsel %vm21, %v152, %v97
    %v155 = vsel %vm147, %v154, %v68
    %v156 = vmax.f32 %v109, 1e-20
    %v157 = vlog2.pop %v156
    %v158 = vmul.f32 %v157, 0.6931472
    %v159 = vmax.f32 %v110, 1e-20
    %v160 = vlog2.pop %v159
    %v161 = vmul.f32 %v160, 0.6931472
    %v162 = vsel %vm126, %v161, 0.0
    %v163 = vsel %vm120, %v158, %v162
    %v164 = vadd.f32 %v77, %v163
    %v165 = vsub.f32 %v130, 1.0
    %167 = vset.pattern.permute.xlu0 0
    %168 = vperm.xlu0 %167, %v165
    %v169 = vpop.permute.xlu0 %168
    %v171 = vsel %vm21, %v169, %v96
    %173 = vset.pattern.permute.xlu0 0
    %174 = vperm.xlu0 %173, %v132
    %v175 = vpop.permute.xlu0 %174
    %v177 = vsel %vm21, %v175, %v97
    %v178 = vsel %vm120, 1, 0
    %179 = vset.pattern.permute.xlu0 0
    %180 = vperm.xlu0 %179, %v178
    %v181 = vpop.permute.xlu0 %180
    %vm182 = vcmp.eq.s32.totalorder %v181, 1
    %v183 = vsel %vm182, %v171, %v96
    %v184 = vsel %vm182, %v177, %v97
    %v185 = vsub.f32 %v183, %v184
    %v186 = vadd.f32 %v183, %v184
    %vm187 = vcmp.le.f32.partialorder %v186, 3.0
    %vm188 = vcmp.gt.f32.partialorder %v185, 3.0
    %v189 = vsub.f32 %v186, %v185
    %vm190 = vcmp.eq.f32.partialorder %v189, 0.0
    %v191 = vsel %vm190, 1.0, %v189
    %v192 = vsub.f32 3.0, %v185
    %v193 = vrcp.pop %v191
    %v194 = vmul.f32 %v192, %v193
    %v195 = vsel %vm188, 0.0, %v194
    %v196 = vsel %vm187, 1.0, %v195
    %v197 = vsub.f32 1.0, %v196
    %199 = vrot.lane.b32.xlu0 %v196, 2
    %v200 = vpop.permute.xlu0 %199
    %vm202 = vcmp.lt.f32.partialorder %v37, %v200
    %v203 = vsel %vm202, 1, 0
    %204 = vrot.lane.b32.xlu0 %v203, 126
    %v205 = vpop.permute.xlu0 %204
    %vm206 = vcmp.ne.s32.totalorder %v205, 0
    %vm207 = vmand %vm120, %vm206
    %vm208 = vmxor %vm202, 1
    %v209 = vsel %vm208, 1, 0
    %210 = vrot.lane.b32.xlu0 %v209, 126
    %v211 = vpop.permute.xlu0 %210
    %vm212 = vcmp.ne.s32.totalorder %v211, 0
    %vm213 = vmand %vm120, %vm212
    %v214 = vmin.f32 %v186, 3.0
    %v215 = vmax.f32 %v185, 3.0
    %v216 = vadd.f32 %v185, %v214
    %v217 = vmul.f32 %v216, 0.5
    %v218 = vsub.f32 %v214, %v185
    %v219 = vmul.f32 %v218, 0.5
    %v220 = vadd.f32 %v215, %v186
    %v221 = vmul.f32 %v220, 0.5
    %v222 = vsub.f32 %v186, %v215
    %v223 = vmul.f32 %v222, 0.5
    %225 = vset.pattern.permute.xlu0 0
    %226 = vperm.xlu0 %225, %v221
    %v227 = vpop.permute.xlu0 %226
    %v229 = vsel %vm21, %v227, %v183
    %v230 = vsel %vm213, 1, 0
    %231 = vset.pattern.permute.xlu0 0
    %232 = vperm.xlu0 %231, %v230
    %v233 = vpop.permute.xlu0 %232
    %vm234 = vcmp.eq.s32.totalorder %v233, 1
    %v235 = vsel %vm234, %v229, %v148
    %237 = vset.pattern.permute.xlu0 0
    %238 = vperm.xlu0 %237, %v223
    %v239 = vpop.permute.xlu0 %238
    %v241 = vsel %vm21, %v239, %v184
    %v242 = vsel %vm234, %v241, %v155
    %v243 = vmax.f32 %v196, 1e-20
    %v244 = vlog2.pop %v243
    %v245 = vmul.f32 %v244, 0.6931472
    %v246 = vmax.f32 %v197, 1e-20
    %v247 = vlog2.pop %v246
    %v248 = vmul.f32 %v247, 0.6931472
    %v249 = vsel %vm213, %v248, 0.0
    %v250 = vsel %vm207, %v245, %v249
    %v251 = vadd.f32 %v164, %v250
    %v252 = vsub.f32 %v217, 1.0
    %254 = vset.pattern.permute.xlu0 0
    %255 = vperm.xlu0 %254, %v252
    %v256 = vpop.permute.xlu0 %255
    %v258 = vsel %vm21, %v256, %v183
    %260 = vset.pattern.permute.xlu0 0
    %261 = vperm.xlu0 %260, %v219
    %v262 = vpop.permute.xlu0 %261
    %v264 = vsel %vm21, %v262, %v184
    %v265 = vsel %vm207, 1, 0
    %266 = vset.pattern.permute.xlu0 0
    %267 = vperm.xlu0 %266, %v265
    %v268 = vpop.permute.xlu0 %267
    %vm269 = vcmp.eq.s32.totalorder %v268, 1
    %v270 = vsel %vm269, %v258, %v183
    %v271 = vsel %vm269, %v264, %v184
    %v272 = vsub.f32 %v270, %v271
    %v273 = vadd.f32 %v270, %v271
    %vm274 = vcmp.le.f32.partialorder %v273, 3.0
    %vm275 = vcmp.gt.f32.partialorder %v272, 3.0
    %v276 = vsub.f32 %v273, %v272
    %vm277 = vcmp.eq.f32.partialorder %v276, 0.0
    %v278 = vsel %vm277, 1.0, %v276
    %v279 = vsub.f32 3.0, %v272
    %v280 = vrcp.pop %v278
    %v281 = vmul.f32 %v279, %v280
    %v282 = vsel %vm275, 0.0, %v281
    %v283 = vsel %vm274, 1.0, %v282
    %v284 = vsub.f32 1.0, %v283
    %286 = vrot.lane.b32.xlu0 %v283, 3
    %v287 = vpop.permute.xlu0 %286
    %vm289 = vcmp.lt.f32.partialorder %v37, %v287
    %v290 = vsel %vm289, 1, 0
    %291 = vrot.lane.b32.xlu0 %v290, 125
    %v292 = vpop.permute.xlu0 %291
    %vm293 = vcmp.ne.s32.totalorder %v292, 0
    %vm294 = vmand %vm207, %vm293
    %vm295 = vmxor %vm289, 1
    %v296 = vsel %vm295, 1, 0
    %297 = vrot.lane.b32.xlu0 %v296, 125
    %v298 = vpop.permute.xlu0 %297
    %vm299 = vcmp.ne.s32.totalorder %v298, 0
    %vm300 = vmand %vm207, %vm299
    %v301 = vmin.f32 %v273, 3.0
    %v302 = vmax.f32 %v272, 3.0
    %v303 = vadd.f32 %v272, %v301
    %v304 = vmul.f32 %v303, 0.5
    %v305 = vsub.f32 %v301, %v272
    %v306 = vmul.f32 %v305, 0.5
    %v307 = vadd.f32 %v302, %v273
    %v308 = vmul.f32 %v307, 0.5
    %v309 = vsub.f32 %v273, %v302
    %v310 = vmul.f32 %v309, 0.5
    %312 = vset.pattern.permute.xlu0 0
    %313 = vperm.xlu0 %312, %v308
    %v314 = vpop.permute.xlu0 %313
    %v316 = vsel %vm21, %v314, %v270
    %v317 = vsel %vm300, 1, 0
    %318 = vset.pattern.permute.xlu0 0
    %319 = vperm.xlu0 %318, %v317
    %v320 = vpop.permute.xlu0 %319
    %vm321 = vcmp.eq.s32.totalorder %v320, 1
    %v322 = vsel %vm321, %v316, %v235
    %324 = vset.pattern.permute.xlu0 0
    %325 = vperm.xlu0 %324, %v310
    %v326 = vpop.permute.xlu0 %325
    %v328 = vsel %vm21, %v326, %v271
    %v329 = vsel %vm321, %v328, %v242
    %v330 = vmax.f32 %v283, 1e-20
    %v331 = vlog2.pop %v330
    %v332 = vmul.f32 %v331, 0.6931472
    %v333 = vmax.f32 %v284, 1e-20
    %v334 = vlog2.pop %v333
    %v335 = vmul.f32 %v334, 0.6931472
    %v336 = vsel %vm300, %v335, 0.0
    %v337 = vsel %vm294, %v332, %v336
    %v338 = vadd.f32 %v251, %v337
    %v339 = vsub.f32 %v304, 1.0
    %341 = vset.pattern.permute.xlu0 0
    %342 = vperm.xlu0 %341, %v339
    %v343 = vpop.permute.xlu0 %342
    %v345 = vsel %vm21, %v343, %v270
    %347 = vset.pattern.permute.xlu0 0
    %348 = vperm.xlu0 %347, %v306
    %v349 = vpop.permute.xlu0 %348
    %v351 = vsel %vm21, %v349, %v271
    %v352 = vsel %vm294, 1, 0
    %353 = vset.pattern.permute.xlu0 0
    %354 = vperm.xlu0 %353, %v352
    %v355 = vpop.permute.xlu0 %354
    %vm356 = vcmp.eq.s32.totalorder %v355, 1
    %v357 = vsel %vm356, %v345, %v270
    %v358 = vsel %vm356, %v351, %v271
    %v359 = vsub.f32 %v357, %v358
    %v360 = vadd.f32 %v357, %v358
    %vm361 = vcmp.le.f32.partialorder %v360, 3.0
    %vm362 = vcmp.gt.f32.partialorder %v359, 3.0
    %v363 = vsub.f32 %v360, %v359
    %vm364 = vcmp.eq.f32.partialorder %v363, 0.0
    %v365 = vsel %vm364, 1.0, %v363
    %v366 = vsub.f32 3.0, %v359
    %v367 = vrcp.pop %v365
    %v368 = vmul.f32 %v366, %v367
    %v369 = vsel %vm362, 0.0, %v368
    %v370 = vsel %vm361, 1.0, %v369
    %v371 = vsub.f32 1.0, %v370
    %373 = vrot.lane.b32.xlu0 %v370, 4
    %v374 = vpop.permute.xlu0 %373
    %vm376 = vcmp.lt.f32.partialorder %v37, %v374
    %v377 = vsel %vm376, 1, 0
    %378 = vrot.lane.b32.xlu0 %v377, 124
    %v379 = vpop.permute.xlu0 %378
    %vm380 = vcmp.ne.s32.totalorder %v379, 0
    %vm381 = vmand %vm294, %vm380
    %vm382 = vmxor %vm376, 1
    %v383 = vsel %vm382, 1, 0
    %384 = vrot.lane.b32.xlu0 %v383, 124
    %v385 = vpop.permute.xlu0 %384
    %vm386 = vcmp.ne.s32.totalorder %v385, 0
    %vm387 = vmand %vm294, %vm386
    %v388 = vmin.f32 %v360, 3.0
    %v389 = vmax.f32 %v359, 3.0
    %v390 = vadd.f32 %v359, %v388
    %v391 = vmul.f32 %v390, 0.5
    %v392 = vsub.f32 %v388, %v359
    %v393 = vmul.f32 %v392, 0.5
    %v394 = vadd.f32 %v389, %v360
    %v395 = vmul.f32 %v394, 0.5
    %v396 = vsub.f32 %v360, %v389
    %v397 = vmul.f32 %v396, 0.5
    %399 = vset.pattern.permute.xlu0 0
    %400 = vperm.xlu0 %399, %v395
    %v401 = vpop.permute.xlu0 %400
    %v403 = vsel %vm21, %v401, %v357
    %v404 = vsel %vm387, 1, 0
    %405 = vset.pattern.permute.xlu0 0
    %406 = vperm.xlu0 %405, %v404
    %v407 = vpop.permute.xlu0 %406
    %vm408 = vcmp.eq.s32.totalorder %v407, 1
    %v409 = vsel %vm408, %v403, %v322
    %411 = vset.pattern.permute.xlu0 0
    %412 = vperm.xlu0 %411, %v397
    %v413 = vpop.permute.xlu0 %412
    %v415 = vsel %vm21, %v413, %v358
    %v416 = vsel %vm408, %v415, %v329
    %v417 = vmax.f32 %v370, 1e-20
    %v418 = vlog2.pop %v417
    %v419 = vmul.f32 %v418, 0.6931472
    %v420 = vmax.f32 %v371, 1e-20
    %v421 = vlog2.pop %v420
    %v422 = vmul.f32 %v421, 0.6931472
    %v423 = vsel %vm387, %v422, 0.0
    %v424 = vsel %vm381, %v419, %v423
    %v425 = vadd.f32 %v338, %v424
    %v426 = vsub.f32 %v391, 1.0
    %428 = vset.pattern.permute.xlu0 0
    %429 = vperm.xlu0 %428, %v426
    %v430 = vpop.permute.xlu0 %429
    %v432 = vsel %vm21, %v430, %v357
    %434 = vset.pattern.permute.xlu0 0
    %435 = vperm.xlu0 %434, %v393
    %v436 = vpop.permute.xlu0 %435
    %v438 = vsel %vm21, %v436, %v358
    %v439 = vsel %vm381, 1, 0
    %440 = vset.pattern.permute.xlu0 0
    %441 = vperm.xlu0 %440, %v439
    %v442 = vpop.permute.xlu0 %441
    %vm443 = vcmp.eq.s32.totalorder %v442, 1
    %v444 = vsel %vm443, %v432, %v357
    %v445 = vsel %vm443, %v438, %v358
    %v446 = vsub.f32 %v444, %v445
    %v447 = vadd.f32 %v444, %v445
    %vm448 = vcmp.le.f32.partialorder %v447, 3.0
    %vm449 = vcmp.gt.f32.partialorder %v446, 3.0
    %v450 = vsub.f32 %v447, %v446
    %vm451 = vcmp.eq.f32.partialorder %v450, 0.0
    %v452 = vsel %vm451, 1.0, %v450
    %v453 = vsub.f32 3.0, %v446
    %v454 = vrcp.pop %v452
    %v455 = vmul.f32 %v453, %v454
    %v456 = vsel %vm449, 0.0, %v455
    %v457 = vsel %vm448, 1.0, %v456
    %v458 = vsub.f32 1.0, %v457
    %460 = vrot.lane.b32.xlu0 %v457, 5
    %v461 = vpop.permute.xlu0 %460
    %vm463 = vcmp.lt.f32.partialorder %v37, %v461
    %v464 = vsel %vm463, 1, 0
    %465 = vrot.lane.b32.xlu0 %v464, 123
    %v466 = vpop.permute.xlu0 %465
    %vm467 = vcmp.ne.s32.totalorder %v466, 0
    %vm468 = vmand %vm381, %vm467
    %vm469 = vmxor %vm463, 1
    %v470 = vsel %vm469, 1, 0
    %471 = vrot.lane.b32.xlu0 %v470, 123
    %v472 = vpop.permute.xlu0 %471
    %vm473 = vcmp.ne.s32.totalorder %v472, 0
    %vm474 = vmand %vm381, %vm473
    %v475 = vmin.f32 %v447, 3.0
    %v476 = vmax.f32 %v446, 3.0
    %v477 = vadd.f32 %v446, %v475
    %v478 = vmul.f32 %v477, 0.5
    %v479 = vsub.f32 %v475, %v446
    %v480 = vmul.f32 %v479, 0.5
    %v481 = vadd.f32 %v476, %v447
    %v482 = vmul.f32 %v481, 0.5
    %v483 = vsub.f32 %v447, %v476
    %v484 = vmul.f32 %v483, 0.5
    %486 = vset.pattern.permute.xlu0 0
    %487 = vperm.xlu0 %486, %v482
    %v488 = vpop.permute.xlu0 %487
    %v490 = vsel %vm21, %v488, %v444
    %v491 = vsel %vm474, 1, 0
    %492 = vset.pattern.permute.xlu0 0
    %493 = vperm.xlu0 %492, %v491
    %v494 = vpop.permute.xlu0 %493
    %vm495 = vcmp.eq.s32.totalorder %v494, 1
    %v496 = vsel %vm495, %v490, %v409
    %498 = vset.pattern.permute.xlu0 0
    %499 = vperm.xlu0 %498, %v484
    %v500 = vpop.permute.xlu0 %499
    %v502 = vsel %vm21, %v500, %v445
    %v503 = vsel %vm495, %v502, %v416
    %v504 = vmax.f32 %v457, 1e-20
    %v505 = vlog2.pop %v504
    %v506 = vmul.f32 %v505, 0.6931472
    %v507 = vmax.f32 %v458, 1e-20
    %v508 = vlog2.pop %v507
    %v509 = vmul.f32 %v508, 0.6931472
    %v510 = vsel %vm474, %v509, 0.0
    %v511 = vsel %vm468, %v506, %v510
    %v512 = vadd.f32 %v425, %v511
    %v513 = vsub.f32 %v478, 1.0
    %515 = vset.pattern.permute.xlu0 0
    %516 = vperm.xlu0 %515, %v513
    %v517 = vpop.permute.xlu0 %516
    %v519 = vsel %vm21, %v517, %v444
    %521 = vset.pattern.permute.xlu0 0
    %522 = vperm.xlu0 %521, %v480
    %v523 = vpop.permute.xlu0 %522
    %v525 = vsel %vm21, %v523, %v445
    %v526 = vsel %vm468, 1, 0
    %527 = vset.pattern.permute.xlu0 0
    %528 = vperm.xlu0 %527, %v526
    %v529 = vpop.permute.xlu0 %528
    %vm530 = vcmp.eq.s32.totalorder %v529, 1
    %v531 = vsel %vm530, %v519, %v496
    %vm532 = vcmask 261120
    %533 = vst.msk [vmem:[#allocation2] sm:$0xff] %vm532, %v531
    %v534 = vsel %vm530, %v525, %v503
    %535 = vst.msk [vmem:[#allocation4] sm:$0xff] %vm532, %v534
    %vm536 = vcmask 7168
    %537 = vst.msk [vmem:[%s5] sm:$0xff] %vm536, %v512
    // Predicated region
    $region14: #{forward.1} parent=1 // pred_check
      _
    $region15: #{forward.1} parent=1 // pred_check_branch
      %539 = sbr.rel (0) target = $region17
    $region16: #{forward.1} parent=1 // pred_region
      %s541 = ssub.s32 128, 128
      %542 = vsyncadd [#allocation3], %s541
      %s544 = sshll.u32 [#allocation2], 4
      %s545 = int_to_ptr.vmem [resolvable:$true] %s544
      %547 = dma.vmem_to_hbm [thread:$0]  %s545, 128, %s3, [#allocation3]
    $region17: #{forward.1} parent=1 // pred_fallthru
      _
    // Predicated region
    $region18: #{forward.1} parent=1 // pred_check
      _
    $region19: #{forward.1} parent=1 // pred_check_branch
      %549 = sbr.rel (0) target = $region21
    $region20: #{forward.1} parent=1 // pred_region
      %s551 = ssub.s32 128, 128
      %552 = vsyncadd [#allocation5], %s551
      %s554 = sshll.u32 [#allocation4], 4
      %s555 = int_to_ptr.vmem [resolvable:$true] %s554
      %557 = dma.vmem_to_hbm [thread:$0]  %s555, 128, %s4, [#allocation5]
    $region21: #{forward.1} parent=1 // pred_fallthru
      _
    // Predicated region
    $region22: #{forward.1} parent=1 // pred_check
      _
    $region23: #{forward.1} parent=1 // pred_check_branch
      %559 = sbr.rel (0) target = $region25
    $region24: #{forward.1} parent=1 // pred_region
      _
    $region25: #{forward.1} parent=1 // pred_fallthru
      _
    // Predicated region
    $region26: #{forward.1} parent=1 // pred_check
      _
    $region27: #{forward.1} parent=1 // pred_check_branch
      %561 = sbr.rel (0) target = $region29
    $region28: #{forward.1} parent=1 // pred_region
      %562 = dma.done [#allocation3], 128
    $region29: #{forward.1} parent=1 // pred_fallthru
      _
    // Predicated region
    $region30: #{forward.1} parent=1 // pred_check
      _
    $region31: #{forward.1} parent=1 // pred_check_branch
      %564 = sbr.rel (0) target = $region33
    $region32: #{forward.1} parent=1 // pred_region
      %565 = dma.done [#allocation5], 128
    $region33: #{forward.1} parent=1 // pred_fallthru
      _
    // Predicated region
    $region34: #{forward.1} parent=1 // pred_check
      _
    $region35: #{forward.1} parent=1 // pred_check_branch
      %567 = sbr.rel (0) target = $region37
    $region36: #{forward.1} parent=1 // pred_region
      _
    $region37: #{forward.1} parent=1 // pred_fallthru
      _
    %568 = vsyncpa [#allocation3], 1
    %569 = vsyncpa [#allocation5], 1

</llo_original>
